<compile_context>
chip_gen: v6e
topology: v6e:2x2x1
jax: 0.10.0
libtpu: 0.0.40
codegen_flags: <defaults>
</compile_context>

<pallas_src>
import functools

import jax
import jax.numpy as jnp
from jax.experimental import pallas as pl
from jax.experimental.pallas import tpu as pltpu


def _dec_linear_kernel(x_ref, thr_ref, w_ref, res_ref, b_ref, sc_ref, o_ref):
    """Grid = (B//tm, N//tn, K//tk); K is the trailing 'arbitrary' reduction axis.

    o_ref (f32, block index constant across k) is the accumulator:
      k == 0 : o  = bias
      each k : o += x @ W  +  gate(x) @ dequant4(res) * scales
    """
    k = pl.program_id(2)

    @pl.when(k == 0)
    def _init():
        o_ref[...] = jnp.broadcast_to(b_ref[...], o_ref.shape)

    x = x_ref[...]                                            # (tm, tk) bf16

    # DEC activation gate, computed in-kernel (no separate xg HBM stream).
    gate = jnp.abs(x.astype(jnp.float32)) > thr_ref[...]     # (tm, tk)
    xg = jnp.where(gate, x, jnp.zeros_like(x))                # bf16

    # Base matmul on the MXU, f32 accumulation.
    o_ref[...] += jnp.dot(x, w_ref[...], preferred_element_type=jnp.float32)

    # Residual correction: 4-bit codes stay packed in HBM (uint8 = 2 codes) and
    # are unpacked in-register.  Packing layout (see pack_dec_residual): within
    # each tn-wide output tile, packed column q holds
    #   low  nibble -> output column q           (first  tn/2 columns)
    #   high nibble -> output column q + tn//2   (second tn/2 columns)
    p = res_ref[...].astype(jnp.int32)                        # (tk, tn//2)
    lo = ((p << 28) >> 28).astype(jnp.bfloat16)               # sign-extended low nibble
    hi = ((p << 24) >> 28).astype(jnp.bfloat16)               # sign-extended high nibble

    half = o_ref.shape[1] // 2                                # multiple of 128
    o_ref[:, :half] += (jnp.dot(xg, lo, preferred_element_type=jnp.float32)
                        * sc_ref[:, :half])
    o_ref[:, half:] += (jnp.dot(xg, hi, preferred_element_type=jnp.float32)
                        * sc_ref[:, half:])


@functools.partial(jax.jit, static_argnames=("tm", "tn", "tk"))
def dec_linear(x, w_t, b, res_packed, scales, thresholds, *,
               tm=256, tn=512, tk=2048):
    """x: (B, K) f32; w_t: (K, N) f32; b: (N,) f32;
    res_packed: (K, N//2) uint8 (from pack_dec_residual with the SAME tn);
    scales: (N,) f32; thresholds: (K,) f32.  Returns (B, N) f32."""
    B, K = x.shape
    _, N = w_t.shape
    tm = min(tm, B)
    tn = min(tn, N)
    tk = min(tk, K)
    assert B % tm == 0 and N % tn == 0 and K % tk == 0, "dims must divide tiles"
    assert tm % 8 == 0, "tm must be a multiple of 8 (sublane constraint)"
    assert tk % 128 == 0, "tk must be a multiple of 128"
    assert tn % 256 == 0, "tn must be a multiple of 256 (packed 4-bit layout)"
    assert res_packed.shape == (K, N // 2) and res_packed.dtype == jnp.uint8

    # Streaming dtypes; all matmuls accumulate in f32 on the MXU.
    x_bf = x.astype(jnp.bfloat16)
    w_bf = w_t.astype(jnp.bfloat16)
    b2 = b.reshape(1, N).astype(jnp.float32)
    sc2 = scales.reshape(1, N).astype(jnp.float32)
    thr2 = thresholds.reshape(1, K).astype(jnp.float32)

    gm, gn, gk = B // tm, N // tn, K // tk

    cost = pl.CostEstimate(
        flops=4 * B * K * N,                    # two (B,K)x(K,N) matmuls
        transcendentals=0,
        bytes_accessed=(B * K * 2 * gn          # x re-streamed once per N tile
                        + K * 4 * gm * gn       # thresholds (tiny)
                        + K * N * 2 * gm        # W (bf16), re-streamed per M tile
                        + (K * N // 2) * gm     # packed residual (0.5 B/elem)
                        + N * 8                 # bias + scales
                        + B * N * 4),           # output writeback
    )

    return pl.pallas_call(
        _dec_linear_kernel,
        out_shape=jax.ShapeDtypeStruct((B, N), jnp.float32),
        grid_spec=pltpu.PrefetchScalarGridSpec(
            num_scalar_prefetch=0,
            grid=(gm, gn, gk),
            in_specs=[
                pl.BlockSpec((tm, tk), lambda i, j, k: (i, k)),        # x     (bf16)
                pl.BlockSpec((1, tk), lambda i, j, k: (0, k)),         # thr   (f32)
                pl.BlockSpec((tk, tn), lambda i, j, k: (k, j)),        # W     (bf16)
                pl.BlockSpec((tk, tn // 2), lambda i, j, k: (k, j)),   # res   (u8, packed 4-bit)
                pl.BlockSpec((1, tn), lambda i, j, k: (0, j)),         # bias  (f32)
                pl.BlockSpec((1, tn), lambda i, j, k: (0, j)),         # scale (f32)
            ],
            out_specs=pl.BlockSpec((tm, tn), lambda i, j, k: (i, j)),
        ),
        compiler_params=pltpu.CompilerParams(
            dimension_semantics=("parallel", "parallel", "arbitrary"),
            # Double-buffered footprint at default tiles is ~9 MiB; 48 MiB keeps
            # headroom under v7x's 64 MiB physical VMEM while allowing larger
            # tiles on v5e/v6e (128 MiB).
            vmem_limit_bytes=48 * 1024 * 1024,
        ),
        cost_estimate=cost,
    )(x_bf, thr2, w_bf, res_packed, b2, sc2)


# ----------------------------------------------------------------------------
# Load-time glue (analogue of load_dec_data / create_dec_config).
# ----------------------------------------------------------------------------

def _unpack_q_residual_codes(q_residual, out_features):
    """(K, N//8) int32 -> (K, N) raw 4-bit codes in [0, 16)."""
    K, n_packed = q_residual.shape
    shifts = jnp.arange(8, dtype=jnp.int32) * 4                        # (8,)
    nibbles = (q_residual[:, :, None] >> shifts[None, None, :]) & 0xF  # (K, N//8, 8)
    codes = nibbles.reshape(K, n_packed * 8)
    assert codes.shape == (K, out_features)
    return codes


def unpack_q_residual_to_int8(q_residual, out_features):
    """Canonical signed residual (K, N) int8 in [-8, 7] (reference path)."""
    codes = _unpack_q_residual_codes(q_residual, out_features)
    return jnp.where(codes >= 8, codes - 16, codes).astype(jnp.int8)


def pack_dec_residual(q_residual, out_features, tn):
    """One-time repack so the kernel streams 4-bit codes at 0.5 B/element and
    unpacks with a tile-local low/high split (no cross-lane interleave).
    `tn` MUST match the tn passed to dec_linear."""
    codes = _unpack_q_residual_codes(q_residual, out_features)        # (K, N)
    K, N = codes.shape
    assert N % tn == 0 and tn % 256 == 0
    c = codes.reshape(K, N // tn, tn)
    lo = c[:, :, : tn // 2]                                           # -> low nibble
    hi = c[:, :, tn // 2:]                                            # -> high nibble
    packed = (lo | (hi << 4)).astype(jnp.uint8)                       # (K, N//tn, tn//2)
    return packed.reshape(K, N // 2)


def dec_linear_reference(x, w_t, b, res_i8, scales, thresholds):
    """Plain-JAX reference using the same bf16 operands / f32 accumulation."""
    x_bf = x.astype(jnp.bfloat16)
    w_bf = w_t.astype(jnp.bfloat16)
    xg = jnp.where(jnp.abs(x_bf.astype(jnp.float32)) > thresholds[None, :],
                   x_bf, jnp.zeros_like(x_bf))
    y = jnp.dot(x_bf, w_bf, preferred_element_type=jnp.float32)
    y = y + jnp.dot(xg, res_i8.astype(jnp.bfloat16),
                    preferred_element_type=jnp.float32) * scales[None, :]
    return y + b[None, :]


if __name__ == "__main__":
    # Small shapes consistent with the module (out_features % 8 == 0).
    # Tiles chosen so every grid axis has >1 block: grid = (2, 2, 2).
    batch, in_features, out_features = 16, 256, 512
    tm, tn, tk = 8, 256, 128

    key = jax.random.PRNGKey(0)
    k_x, k_w, k_b, k_q, k_s, k_t = jax.random.split(key, 6)

    x = jax.random.normal(k_x, (batch, in_features), dtype=jnp.float32)
    weight = jax.random.normal(k_w, (out_features, in_features), dtype=jnp.float32) * 0.05
    bias = jax.random.normal(k_b, (out_features,), dtype=jnp.float32) * 0.1
    q_residual = jax.random.randint(
        k_q, (in_features, out_features // 8), minval=-(2 ** 31), maxval=2 ** 31 - 1,
        dtype=jnp.int32)
    scales = jax.random.uniform(k_s, (out_features,), dtype=jnp.float32) * 0.01
    thresholds = jax.random.uniform(k_t, (in_features,), dtype=jnp.float32) * 0.5

    # Glue: transpose weight to (K, N); repack the residual once for streaming.
    w_t = weight.T
    res_packed = pack_dec_residual(q_residual, out_features, tn)     # kernel stream
    res_i8 = unpack_q_residual_to_int8(q_residual, out_features)     # reference only

    out = dec_linear(x, w_t, bias, res_packed, scales, thresholds, tm=tm, tn=tn, tk=tk)
    out = jax.block_until_ready(out)

    ref = dec_linear_reference(x, w_t, bias, res_i8, scales, thresholds)
    assert out.shape == (batch, out_features)
    assert jnp.allclose(out, ref, atol=2e-2, rtol=2e-2), "mismatch vs reference"

    print("KERNEL_OK")
</pallas_src>

<mosaic_0001>
module attributes {stable_mosaic.version = 11 : i64} {
  func.func @_dec_linear_kernel(%arg0: i32, %arg1: i32, %arg2: i32, %arg3: memref<8x128xbf16, #tpu.memory_space<vmem>>, %arg4: memref<1x128xf32, #tpu.memory_space<vmem>>, %arg5: memref<128x256xbf16, #tpu.memory_space<vmem>>, %arg6: memref<128x128xi8, #tpu.memory_space<vmem>>, %arg7: memref<1x256xf32, #tpu.memory_space<vmem>>, %arg8: memref<1x256xf32, #tpu.memory_space<vmem>>, %arg9: memref<8x256xf32, #tpu.memory_space<vmem>>) attributes {dimension_semantics = [#tpu.dimension_semantics<parallel>, #tpu.dimension_semantics<parallel>, #tpu.dimension_semantics<arbitrary>], iteration_bounds = array<i64: 2, 2, 2>, scalar_prefetch = 0 : i64, scratch_operands = 0 : i64, tpu.core_type = #tpu.core_type<tc>, window_params = [{transform_indices = @transform_0, window_bounds = array<i64: 8, 128>}, {transform_indices = @transform_1, window_bounds = array<i64: 1, 128>}, {transform_indices = @transform_2, window_bounds = array<i64: 128, 256>}, {transform_indices = @transform_3, window_bounds = array<i64: 128, 128>}, {transform_indices = @transform_4, window_bounds = array<i64: 1, 256>}, {transform_indices = @transform_5, window_bounds = array<i64: 1, 256>}, {transform_indices = @transform_6, window_bounds = array<i64: 8, 256>}]} {
    %c0_i32 = arith.constant 0 : i32
    %0 = arith.cmpi eq, %arg2, %c0_i32 : i32
    %1 = arith.extui %0 : i1 to i32
    %c0_i32_0 = arith.constant 0 : i32
    %2 = arith.cmpi ne, %1, %c0_i32_0 : i32
    scf.if %2 {
      %c0_28 = arith.constant 0 : index
      %c0_29 = arith.constant 0 : index
      %42 = vector.load %arg7[%c0_28, %c0_29] : memref<1x256xf32, #tpu.memory_space<vmem>>, vector<1x256xf32>
      %43 = vector.shape_cast %42 : vector<1x256xf32> to vector<1x256xf32>
      %44 = vector.broadcast %43 : vector<1x256xf32> to vector<8x256xf32>
      %c0_30 = arith.constant 0 : index
      %c0_31 = arith.constant 0 : index
      %45 = vector.load %arg9[%c0_30, %c0_31] : memref<8x256xf32, #tpu.memory_space<vmem>>, vector<8x256xf32>
      tpu.vector_store %arg9[%c0_30, %c0_31], %44 {strides = array<i32>} : memref<8x256xf32, #tpu.memory_space<vmem>>, vector<8x256xf32>,
    } else {
    }
    %c0 = arith.constant 0 : index
    %c0_1 = arith.constant 0 : index
    %3 = vector.load %arg3[%c0, %c0_1] : memref<8x128xbf16, #tpu.memory_space<vmem>>, vector<8x128xbf16>
    %4 = arith.extf %3 : vector<8x128xbf16> to vector<8x128xf32>
    %5 = math.absf %4 : vector<8x128xf32>
    %c0_2 = arith.constant 0 : index
    %c0_3 = arith.constant 0 : index
    %6 = vector.load %arg4[%c0_2, %c0_3] : memref<1x128xf32, #tpu.memory_space<vmem>>, vector<1x128xf32>
    %7 = vector.broadcast %6 : vector<1x128xf32> to vector<8x128xf32>
    %8 = arith.cmpf ogt, %5, %7 : vector<8x128xf32>
    %cst = arith.constant 0.000000e+00 : bf16
    %9 = vector.broadcast %cst : bf16 to vector<8x128xbf16>
    %10 = arith.select %8, %3, %9 : vector<8x128xi1>, vector<8x128xbf16>
    %c0_4 = arith.constant 0 : index
    %c0_5 = arith.constant 0 : index
    %11 = vector.load %arg9[%c0_4, %c0_5] : memref<8x256xf32, #tpu.memory_space<vmem>>, vector<8x256xf32>
    %c0_6 = arith.constant 0 : index
    %c0_7 = arith.constant 0 : index
    %12 = vector.load %arg5[%c0_6, %c0_7] : memref<128x256xbf16, #tpu.memory_space<vmem>>, vector<128x256xbf16>
    %cst_8 = arith.constant dense<0.000000e+00> : vector<8x256xf32>
    %13 = tpu.matmul %3, %12, %cst_8 {dimension_numbers = #tpu.dot_dimension_numbers<[1], [0], [0], [1], [0, 0, 1, 1], [], []>} : vector<8x128xbf16>, vector<128x256xbf16>, vector<8x256xf32> -> vector<8x256xf32>
    %14 = arith.addf %11, %13 : vector<8x256xf32>
    %c0_9 = arith.constant 0 : index
    %c0_10 = arith.constant 0 : index
    %15 = vector.load %arg9[%c0_9, %c0_10] : memref<8x256xf32, #tpu.memory_space<vmem>>, vector<8x256xf32>
    tpu.vector_store %arg9[%c0_9, %c0_10], %14 {strides = array<i32>} : memref<8x256xf32, #tpu.memory_space<vmem>>, vector<8x256xf32>,
    %c0_11 = arith.constant 0 : index
    %c0_12 = arith.constant 0 : index
    %16 = vector.load %arg6[%c0_11, %c0_12] : memref<128x128xi8, #tpu.memory_space<vmem>>, vector<128x128xi8>
    %17 = arith.extui %16 : vector<128x128xi8> to vector<128x128xi32>
    %c28_i32 = arith.constant 28 : i32
    %18 = vector.broadcast %c28_i32 : i32 to vector<128x128xi32>
    %19 = arith.shli %17, %18 : vector<128x128xi32>
    %c28_i32_13 = arith.constant 28 : i32
    %20 = vector.broadcast %c28_i32_13 : i32 to vector<128x128xi32>
    %21 = arith.shrsi %19, %20 : vector<128x128xi32>
    %22 = arith.sitofp %21 : vector<128x128xi32> to vector<128x128xbf16>
    %c24_i32 = arith.constant 24 : i32
    %23 = vector.broadcast %c24_i32 : i32 to vector<128x128xi32>
    %24 = arith.shli %17, %23 : vector<128x128xi32>
    %c28_i32_14 = arith.constant 28 : i32
    %25 = vector.broadcast %c28_i32_14 : i32 to vector<128x128xi32>
    %26 = arith.shrsi %24, %25 : vector<128x128xi32>
    %27 = arith.sitofp %26 : vector<128x128xi32> to vector<128x128xbf16>
    %c0_15 = arith.constant 0 : index
    %c0_16 = arith.constant 0 : index
    %28 = vector.load %arg9[%c0_15, %c0_16] : memref<8x256xf32, #tpu.memory_space<vmem>>, vector<8x128xf32>
    %cst_17 = arith.constant dense<0.000000e+00> : vector<8x128xf32>
    %29 = tpu.matmul %10, %22, %cst_17 {dimension_numbers = #tpu.dot_dimension_numbers<[1], [0], [0], [1], [0, 0, 1, 1], [], []>} : vector<8x128xbf16>, vector<128x128xbf16>, vector<8x128xf32> -> vector<8x128xf32>
    %c0_18 = arith.constant 0 : index
    %c0_19 = arith.constant 0 : index
    %30 = vector.load %arg8[%c0_18, %c0_19] : memref<1x256xf32, #tpu.memory_space<vmem>>, vector<1x128xf32>
    %31 = vector.broadcast %30 : vector<1x128xf32> to vector<8x128xf32>
    %32 = arith.mulf %29, %31 : vector<8x128xf32>
    %33 = arith.addf %28, %32 : vector<8x128xf32>
    %c0_20 = arith.constant 0 : index
    %c0_21 = arith.constant 0 : index
    %34 = vector.load %arg9[%c0_20, %c0_21] : memref<8x256xf32, #tpu.memory_space<vmem>>, vector<8x128xf32>
    tpu.vector_store %arg9[%c0_20, %c0_21], %33 {strides = array<i32>} : memref<8x256xf32, #tpu.memory_space<vmem>>, vector<8x128xf32>,
    %c0_22 = arith.constant 0 : index
    %c128 = arith.constant 128 : index
    %35 = vector.load %arg9[%c0_22, %c128] : memref<8x256xf32, #tpu.memory_space<vmem>>, vector<8x128xf32>
    %cst_23 = arith.constant dense<0.000000e+00> : vector<8x128xf32>
    %36 = tpu.matmul %10, %27, %cst_23 {dimension_numbers = #tpu.dot_dimension_numbers<[1], [0], [0], [1], [0, 0, 1, 1], [], []>} : vector<8x128xbf16>, vector<128x128xbf16>, vector<8x128xf32> -> vector<8x128xf32>
    %c0_24 = arith.constant 0 : index
    %c128_25 = arith.constant 128 : index
    %37 = vector.load %arg8[%c0_24, %c128_25] : memref<1x256xf32, #tpu.memory_space<vmem>>, vector<1x128xf32>
    %38 = vector.broadcast %37 : vector<1x128xf32> to vector<8x128xf32>
    %39 = arith.mulf %36, %38 : vector<8x128xf32>
    %40 = arith.addf %35, %39 : vector<8x128xf32>
    %c0_26 = arith.constant 0 : index
    %c128_27 = arith.constant 128 : index
    %41 = vector.load %arg9[%c0_26, %c128_27] : memref<8x256xf32, #tpu.memory_space<vmem>>, vector<8x128xf32>
    tpu.vector_store %arg9[%c0_26, %c128_27], %40 {strides = array<i32>} : memref<8x256xf32, #tpu.memory_space<vmem>>, vector<8x128xf32>,
    return
  }
  func.func @transform_0(%arg0: i32, %arg1: i32, %arg2: i32) -> (i32, i32) {
    %c0_i32 = arith.constant 0 : i32
    return %arg0, %arg2 : i32, i32
  }
  func.func @transform_1(%arg0: i32, %arg1: i32, %arg2: i32) -> (i32, i32) {
    %c0_i32 = arith.constant 0 : i32
    %c0_i32_0 = arith.constant 0 : i32
    return %c0_i32, %arg2 : i32, i32
  }
  func.func @transform_2(%arg0: i32, %arg1: i32, %arg2: i32) -> (i32, i32) {
    %c0_i32 = arith.constant 0 : i32
    return %arg2, %arg1 : i32, i32
  }
  func.func @transform_3(%arg0: i32, %arg1: i32, %arg2: i32) -> (i32, i32) {
    %c0_i32 = arith.constant 0 : i32
    return %arg2, %arg1 : i32, i32
  }
  func.func @transform_4(%arg0: i32, %arg1: i32, %arg2: i32) -> (i32, i32) {
    %c0_i32 = arith.constant 0 : i32
    %c0_i32_0 = arith.constant 0 : i32
    return %c0_i32, %arg1 : i32, i32
  }
  func.func @transform_5(%arg0: i32, %arg1: i32, %arg2: i32) -> (i32, i32) {
    %c0_i32 = arith.constant 0 : i32
    %c0_i32_0 = arith.constant 0 : i32
    return %c0_i32, %arg1 : i32, i32
  }
  func.func @transform_6(%arg0: i32, %arg1: i32, %arg2: i32) -> (i32, i32) {
    %c0_i32 = arith.constant 0 : i32
    return %arg0, %arg1 : i32, i32
  }
}

</mosaic_0001>

<llo_original>
// kernel: dec_linear.1
$region0: #{dec_linear.1}
  #allocation0 [shape = 'u32[]', space=smem, size = 0x4, offset = 0x4, fixed_abs, tag = 'smem constant byte address 0x4 - core index']
  #allocation1 [shape = 'u32[144,128]{1,0:T(1,128)}', space=vmem, size = 0x12000, scoped, tag = 'internal scratch']
  %s0 = inlined_call_operand.vmem [shape: bf16[16,256], index: 0, kind: input, shape index: {}]
  %s1 = inlined_call_operand.vmem [shape: f32[1,256], index: 1, kind: input, shape index: {}]
  %s2 = inlined_call_operand.vmem [shape: bf16[256,512], index: 2, kind: input, shape index: {}]
  %s3 = inlined_call_operand.vmem [shape: u8[256,256], index: 3, kind: input, shape index: {}]
  %s4 = inlined_call_operand.vmem [shape: f32[1,512], index: 4, kind: input, shape index: {}]
  %s5 = inlined_call_operand.vmem [shape: f32[1,512], index: 5, kind: input, shape index: {}]
  %s6 = inlined_call_operand.hbm [shape: f32[16,512], index: 6, kind: output, shape index: {}]
  %s7 = sld [smem:[#allocation0]]
  $region137: #{dec_linear.1} parent=0
    _
  %s9 = ssub.s32 1, %s7
  %s10 = scalar_select 0, %s9, %s7
  $region1: #{dec_linear.1} parent=0
    #allocation2 [shape = 'u8[131072]{0}', space=vmem, size = 0x20000, scoped, tag = 'input window, operand 2']
    #allocation3 [shape = 'u8[32768]{0}', space=vmem, size = 0x8000, scoped, tag = 'input window, operand 3']
    #allocation4 [shape = 'u8[16384]{0}', space=vmem, size = 0x4000, scoped, tag = 'output window, operand 0']
    #allocation5 [shape = 's32[2]{0}', space=sflag, size = 0x8, scoped, tag = 'scoped memory for dec_linear.1']
    %11 = vsyncpa [#allocation5], 0
    %s12 = scalar_lea.sflag [#allocation5], 1
    %13 = vsyncpa %s12, 0
    loop: start=0, step=1, limit=10
    $region2: #{dec_linear.1} parent=1 // loop_pre_header
      _
    $region3: #{dec_linear.1} parent=1 // loop_header
      %s15 = sphi 0, %s19
      %p16 = scmp.ge.s32.totalorder %s15, 10
      %s22 = sphi 0, %s41
      %s23 = sphi 0, %s37
      %s24 = sphi 0, %s33
      %s25 = sphi 0, %s22
      %s26 = sphi 0, %s23
      %s27 = sphi 0, %s24
      %s28 = sphi 0, %s25
      %s29 = sphi 0, %s26
      %s30 = sphi 0, %s27
      %s46 = sphi 0, %s48
      %s49 = sphi 0, %s46
      %s50 = sphi 0, %s49
      %s66 = sphi 0, %s50
      %s72 = sphi 0, %s74
      %s75 = sphi 0, %s72
      %s76 = sphi 0, %s75
      %s92 = sphi 0, %s76
      %s100 = sphi 0, %s102
      %s103 = sphi 0, %s100
      %s104 = sphi 0, %s103
      %s120 = sphi 0, %s104
      %s128 = sphi 0, %s130
      %s131 = sphi 0, %s128
      %s132 = sphi 0, %s131
      %s148 = sphi 0, %s132
      %s154 = sphi 0, %s156
      %s157 = sphi 0, %s154
      %s158 = sphi 0, %s157
      %s174 = sphi 0, %s158
      %s180 = sphi 0, %s182
      %s183 = sphi 0, %s180
      %s184 = sphi 0, %s183
      %s200 = sphi 0, %s184
      %s208 = sphi 0, %s210
      %s211 = sphi 0, %s208
      %s212 = sphi 0, %s211
      %s228 = sphi 0, %s212
    $region4: #{dec_linear.1} parent=1 // loop_header_branch
      %18 = sbr.rel (%p16) target = $region8
    $region5: #{dec_linear.1} parent=1 // loop_body
      %s20 = ssub.s32 %s15, 1
      %s21 = ssub.s32 %s15, 2
      %s31 = sadd.s32 1, %s24
      %p32 = scmp.ge.s32.totalorder %s31, 2
      %s33 = scalar_select %p32, 0, %s31
      %s34 = sadd.s32 1, %s23
      %s35 = scalar_select %p32, %s34, %s23
      %p36 = scmp.ge.s32.totalorder %s35, 2
      %s37 = scalar_select %p36, 0, %s35
      %s38 = sadd.s32 1, %s22
      %s39 = scalar_select %p36, %s38, %s22
      %p40 = scmp.ge.s32.totalorder %s39, 2
      %s41 = scalar_select %p40, 0, %s39
      %s42 = ssub.s32 %s22, %s41
      %s43 = ssub.s32 %s24, %s33
      %s44 = sor.u32 %s42, %s43
      %p45 = scmp.eq.s32.totalorder %s44, 0
      %s47 = sadd.s32 %s46, 1
      %s48 = scalar_select %p45, %s46, %s47
      %p51 = pneg %p45
      %p52 = scmp.eq.s32.totalorder %s15, 7
      %p53 = por %p51, %p52
      %p54 = scmp.ne.s32.totalorder %s46, %s49
      %p55 = scmp.eq.s32.totalorder %s15, 0
      %p56 = por %p54, %p55
      %p57 = scmp.ne.s32.totalorder %s46, %s49
      %p58 = scmp.eq.s32.totalorder %s20, 7
      %p59 = por %p57, %p58
      %p60 = scmp.ne.s32.totalorder %s49, %s50
      %p61 = scmp.eq.s32.totalorder %s20, 0
      %p62 = por %p60, %p61
      %p63 = scmp.ne.s32.totalorder %s49, %s50
      %p64 = scmp.eq.s32.totalorder %s21, 7
      %p65 = por %p63, %p64
      %p67 = scmp.ne.s32.totalorder %s50, %s66
      %p68 = scmp.eq.s32.totalorder %s21, 0
      %p69 = por %p67, %p68
      %s70 = ssub.s32 %s24, %s33
      %p71 = scmp.eq.s32.totalorder %s70, 0
      %s73 = sadd.s32 %s72, 1
      %s74 = scalar_select %p71, %s72, %s73
      %p77 = pneg %p71
      %p78 = scmp.eq.s32.totalorder %s15, 7
      %p79 = por %p77, %p78
      %p80 = scmp.ne.s32.totalorder %s72, %s75
      %p81 = scmp.eq.s32.totalorder %s15, 0
      %p82 = por %p80, %p81
      %p83 = scmp.ne.s32.totalorder %s72, %s75
      %p84 = scmp.eq.s32.totalorder %s20, 7
      %p85 = por %p83, %p84
      %p86 = scmp.ne.s32.totalorder %s75, %s76
      %p87 = scmp.eq.s32.totalorder %s20, 0
      %p88 = por %p86, %p87
      %p89 = scmp.ne.s32.totalorder %s75, %s76
      %p90 = scmp.eq.s32.totalorder %s21, 7
      %p91 = por %p89, %p90
      %p93 = scmp.ne.s32.totalorder %s76, %s92
      %p94 = scmp.eq.s32.totalorder %s21, 0
      %p95 = por %p93, %p94
      %s96 = ssub.s32 %s24, %s33
      %s97 = ssub.s32 %s23, %s37
      %s98 = sor.u32 %s96, %s97
      %p99 = scmp.eq.s32.totalorder %s98, 0
      %s101 = sadd.s32 %s100, 1
      %s102 = scalar_select %p99, %s100, %s101
      %p105 = pneg %p99
      %p106 = scmp.eq.s32.totalorder %s15, 7
      %p107 = por %p105, %p106
      %p108 = scmp.ne.s32.totalorder %s100, %s103
      %p109 = scmp.eq.s32.totalorder %s15, 0
      %p110 = por %p108, %p109
      %p111 = scmp.ne.s32.totalorder %s100, %s103
      %p112 = scmp.eq.s32.totalorder %s20, 7
      %p113 = por %p111, %p112
      %p114 = scmp.ne.s32.totalorder %s103, %s104
      %p115 = scmp.eq.s32.totalorder %s20, 0
      %p116 = por %p114, %p115
      %p117 = scmp.ne.s32.totalorder %s103, %s104
      %p118 = scmp.eq.s32.totalorder %s21, 7
      %p119 = por %p117, %p118
      %p121 = scmp.ne.s32.totalorder %s104, %s120
      %p122 = scmp.eq.s32.totalorder %s21, 0
      %p123 = por %p121, %p122
      %s124 = ssub.s32 %s24, %s33
      %s125 = ssub.s32 %s23, %s37
      %s126 = sor.u32 %s124, %s125
      %p127 = scmp.eq.s32.totalorder %s126, 0
      %s129 = sadd.s32 %s128, 1
      %s130 = scalar_select %p127, %s128, %s129
      %p133 = pneg %p127
      %p134 = scmp.eq.s32.totalorder %s15, 7
      %p135 = por %p133, %p134
      %p136 = scmp.ne.s32.totalorder %s128, %s131
      %p137 = scmp.eq.s32.totalorder %s15, 0
      %p138 = por %p136, %p137
      %p139 = scmp.ne.s32.totalorder %s128, %s131
      %p140 = scmp.eq.s32.totalorder %s20, 7
      %p141 = por %p139, %p140
      %p142 = scmp.ne.s32.totalorder %s131, %s132
      %p143 = scmp.eq.s32.totalorder %s20, 0
      %p144 = por %p142, %p143
      %p145 = scmp.ne.s32.totalorder %s131, %s132
      %p146 = scmp.eq.s32.totalorder %s21, 7
      %p147 = por %p145, %p146
      %p149 = scmp.ne.s32.totalorder %s132, %s148
      %p150 = scmp.eq.s32.totalorder %s21, 0
      %p151 = por %p149, %p150
      %s152 = ssub.s32 %s23, %s37
      %p153 = scmp.eq.s32.totalorder %s152, 0
      %s155 = sadd.s32 %s154, 1
      %s156 = scalar_select %p153, %s154, %s155
      %p159 = pneg %p153
      %p160 = scmp.eq.s32.totalorder %s15, 7
      %p161 = por %p159, %p160
      %p162 = scmp.ne.s32.totalorder %s154, %s157
      %p163 = scmp.eq.s32.totalorder %s15, 0
      %p164 = por %p162, %p163
      %p165 = scmp.ne.s32.totalorder %s154, %s157
      %p166 = scmp.eq.s32.totalorder %s20, 7
      %p167 = por %p165, %p166
      %p168 = scmp.ne.s32.totalorder %s157, %s158
      %p169 = scmp.eq.s32.totalorder %s20, 0
      %p170 = por %p168, %p169
      %p171 = scmp.ne.s32.totalorder %s157, %s158
      %p172 = scmp.eq.s32.totalorder %s21, 7
      %p173 = por %p171, %p172
      %p175 = scmp.ne.s32.totalorder %s158, %s174
      %p176 = scmp.eq.s32.totalorder %s21, 0
      %p177 = por %p175, %p176
      %s178 = ssub.s32 %s23, %s37
      %p179 = scmp.eq.s32.totalorder %s178, 0
      %s181 = sadd.s32 %s180, 1
      %s182 = scalar_select %p179, %s180, %s181
      %p185 = pneg %p179
      %p186 = scmp.eq.s32.totalorder %s15, 7
      %p187 = por %p185, %p186
      %p188 = scmp.ne.s32.totalorder %s180, %s183
      %p189 = scmp.eq.s32.totalorder %s15, 0
      %p190 = por %p188, %p189
      %p191 = scmp.ne.s32.totalorder %s180, %s183
      %p192 = scmp.eq.s32.totalorder %s20, 7
      %p193 = por %p191, %p192
      %p194 = scmp.ne.s32.totalorder %s183, %s184
      %p195 = scmp.eq.s32.totalorder %s20, 0
      %p196 = por %p194, %p195
      %p197 = scmp.ne.s32.totalorder %s183, %s184
      %p198 = scmp.eq.s32.totalorder %s21, 7
      %p199 = por %p197, %p198
      %p201 = scmp.ne.s32.totalorder %s184, %s200
      %p202 = scmp.eq.s32.totalorder %s21, 0
      %p203 = por %p201, %p202
      %s204 = ssub.s32 %s22, %s41
      %s205 = ssub.s32 %s23, %s37
      %s206 = sor.u32 %s204, %s205
      %p207 = scmp.eq.s32.totalorder %s206, 0
      %s209 = sadd.s32 %s208, 1
      %s210 = scalar_select %p207, %s208, %s209
      %p213 = pneg %p207
      %p214 = scmp.eq.s32.totalorder %s15, 7
      %p215 = por %p213, %p214
      %p216 = scmp.ne.s32.totalorder %s208, %s211
      %p217 = scmp.eq.s32.totalorder %s15, 0
      %p218 = por %p216, %p217
      %p219 = scmp.ne.s32.totalorder %s208, %s211
      %p220 = scmp.eq.s32.totalorder %s20, 7
      %p221 = por %p219, %p220
      %p222 = scmp.ne.s32.totalorder %s211, %s212
      %p223 = scmp.eq.s32.totalorder %s20, 0
      %p224 = por %p222, %p223
      %p225 = scmp.ne.s32.totalorder %s211, %s212
      %p226 = scmp.eq.s32.totalorder %s21, 7
      %p227 = por %p225, %p226
      %p229 = scmp.ne.s32.totalorder %s212, %s228
      %p230 = scmp.eq.s32.totalorder %s21, 0
      %p231 = por %p229, %p230
      %p232 = scmp.le.s32.totalorder 1, %s15
      %p233 = scmp.lt.s32.totalorder %s15, 9
      %p234 = pnand %p232, %p233
      %p235 = pneg %p234
      // Predicated region
      $region9: #{dec_linear.1} parent=5 // pred_check
        _
      $region10: #{dec_linear.1} parent=5 // pred_check_branch
        %237 = sbr.rel (%p234) target = $region12
      $region11: #{dec_linear.1} parent=5 // pred_region
        %s238 = ssub.s32 %s15, 1
      $region12: #{dec_linear.1} parent=5 // pred_fallthru
        _
      %p239 = scmp.lt.s32.totalorder %s15, 8
      // Predicated region
      $region13: #{dec_linear.1} parent=5 // pred_check
        %p240 = pneg %p239
      $region14: #{dec_linear.1} parent=5 // pred_check_branch
        %242 = sbr.rel (%p240) target = $region16
      $region15: #{dec_linear.1} parent=5 // pred_region
        // Predicated region
        $region17: #{dec_linear.1} parent=15 // pred_check
          %p243 = pneg %p56
        $region18: #{dec_linear.1} parent=15 // pred_check_branch
          %245 = sbr.rel (%p243) target = $region20
        $region19: #{dec_linear.1} parent=15 // pred_region
          %p246 = scmp.lt.s32.totalorder %s22, 1
          %s247 = scalar_select %p246, %s22, 1
          %p248 = scmp.lt.s32.totalorder %s24, 1
          %s249 = scalar_select %p248, %s24, 1
          %s250 = smul.addr %s247, 2
          %s251 = sadd.s32 %s249, %s250
          %s252 = smul.addr %s251, 4
          %s253 = scalar_lea.vmem %s0, %s252
        $region20: #{dec_linear.1} parent=15 // pred_fallthru
          _
        // Predicated region
        $region21: #{dec_linear.1} parent=15 // pred_check
          %p254 = pneg %p82
        $region22: #{dec_linear.1} parent=15 // pred_check_branch
          %256 = sbr.rel (%p254) target = $region24
        $region23: #{dec_linear.1} parent=15 // pred_region
          %p257 = scmp.lt.s32.totalorder %s24, 1
          %s258 = scalar_select %p257, %s24, 1
          %s259 = scalar_lea.vmem %s1, %s258
        $region24: #{dec_linear.1} parent=15 // pred_fallthru
          _
        // Predicated region
        $region25: #{dec_linear.1} parent=15 // pred_check
          %p260 = pneg %p110
        $region26: #{dec_linear.1} parent=15 // pred_check_branch
          %262 = sbr.rel (%p260) target = $region28
        $region27: #{dec_linear.1} parent=15 // pred_region
          %s263 = sand.u32 %s100, 1
          %s264 = sand.u32 %s100, 1
          %s265 = smul.addr %s264, 128
          %s266 = scalar_lea.vmem [#allocation2], %s265
          %s267 = smul.u32 16, %s24
          %s268 = smul.u32 2, %s23
          %s269 = smul.addr %s267, 4
          %s270 = sadd.s32 %s268, %s269
          %s271 = smul.addr %s270, 4
          %s272 = scalar_lea.vmem %s2, %s271
          // Predicated region
          $region29: #{dec_linear.1} parent=27 // pred_check
            _
          $region30: #{dec_linear.1} parent=27 // pred_check_branch
            %274 = sbr.rel (0) target = $region32
          $region31: #{dec_linear.1} parent=27 // pred_region
            // Predicated region
            $region33: #{dec_linear.1} parent=31 // pred_check
              _
            $region34: #{dec_linear.1} parent=31 // pred_check_branch
              %276 = sbr.rel (0) target = $region36
            $region35: #{dec_linear.1} parent=31 // pred_region
              // Predicated region
              $region48: #{dec_linear.1} parent=35 // pred_check
                _
              $region49: #{dec_linear.1} parent=35 // pred_check_branch
                %322 = sbr.rel (0) target = $region51
              $region50: #{dec_linear.1} parent=35 // pred_region
                loop: start=0, step=1, limit=1
                $region52: #{dec_linear.1} parent=50 // loop_pre_header
                  _
                $region53: #{dec_linear.1} parent=50 // loop_header
                  %s324 = sphi 0, %s328
                  %p325 = scmp.ge.s32.totalorder %s324, 1
                  %s329 = sphi %s272, %s272
                  %s330 = sphi %s266, %s266
                $region54: #{dec_linear.1} parent=50 // loop_header_branch
                  %327 = sbr.rel (%p325) target = $region58
                $region55: #{dec_linear.1} parent=50 // loop_body
                  %v331 = vld [vmem:[%s329] sm:$0xff]
                  %332 = vst [vmem:[%s330] sm:$0xff] %v331
                  %v333 = vld [vmem:[%s329 + $0x10] sm:$0xff]
                  %334 = vst [vmem:[%s330 + $0x8] sm:$0xff] %v333
                  %v335 = vld [vmem:[%s329 + $0x20] sm:$0xff]
                  %336 = vst [vmem:[%s330 + $0x10] sm:$0xff] %v335
                  %v337 = vld [vmem:[%s329 + $0x30] sm:$0xff]
                  %338 = vst [vmem:[%s330 + $0x18] sm:$0xff] %v337
                  %v339 = vld [vmem:[%s329 + $0x40] sm:$0xff]
                  %340 = vst [vmem:[%s330 + $0x20] sm:$0xff] %v339
                  %v341 = vld [vmem:[%s329 + $0x50] sm:$0xff]
                  %342 = vst [vmem:[%s330 + $0x28] sm:$0xff] %v341
                  %v343 = vld [vmem:[%s329 + $0x60] sm:$0xff]
                  %344 = vst [vmem:[%s330 + $0x30] sm:$0xff] %v343
                  %v345 = vld [vmem:[%s329 + $0x70] sm:$0xff]
                  %346 = vst [vmem:[%s330 + $0x38] sm:$0xff] %v345
                  %v347 = vld [vmem:[%s329 + $0x80] sm:$0xff]
                  %348 = vst [vmem:[%s330 + $0x40] sm:$0xff] %v347
                  %v349 = vld [vmem:[%s329 + $0x90] sm:$0xff]
                  %350 = vst [vmem:[%s330 + $0x48] sm:$0xff] %v349
                  %v351 = vld [vmem:[%s329 + $0xa0] sm:$0xff]
                  %352 = vst [vmem:[%s330 + $0x50] sm:$0xff] %v351
                  %v353 = vld [vmem:[%s329 + $0xb0] sm:$0xff]
                  %354 = vst [vmem:[%s330 + $0x58] sm:$0xff] %v353
                  %v355 = vld [vmem:[%s329 + $0xc0] sm:$0xff]
                  %356 = vst [vmem:[%s330 + $0x60] sm:$0xff] %v355
                  %v357 = vld [vmem:[%s329 + $0xd0] sm:$0xff]
                  %358 = vst [vmem:[%s330 + $0x68] sm:$0xff] %v357
                  %v359 = vld [vmem:[%s329 + $0xe0] sm:$0xff]
                  %360 = vst [vmem:[%s330 + $0x70] sm:$0xff] %v359
                  %v361 = vld [vmem:[%s329 + $0xf0] sm:$0xff]
                  %362 = vst [vmem:[%s330 + $0x78] sm:$0xff] %v361
                $region56: #{dec_linear.1} parent=50 // loop_footer
                  %s328 = sadd.s32 1, %s324
                $region57: #{dec_linear.1} parent=50 // loop_footer_branch
                  %323 = sbr.rel target = $region53
                $region58: #{dec_linear.1} parent=50 // loop_exit
                  _
              $region51: #{dec_linear.1} parent=35 // pred_fallthru
                _
              // Predicated region
              $region59: #{dec_linear.1} parent=35 // pred_check
                _
              $region60: #{dec_linear.1} parent=35 // pred_check_branch
                %364 = sbr.rel target = $region62
              $region61: #{dec_linear.1} parent=35 // pred_region
                _
              $region62: #{dec_linear.1} parent=35 // pred_fallthru
                _
            $region36: #{dec_linear.1} parent=31 // pred_fallthru
              _
            // Predicated region
            $region37: #{dec_linear.1} parent=31 // pred_check
              _
            $region38: #{dec_linear.1} parent=31 // pred_check_branch
              %278 = sbr.rel target = $region40
            $region39: #{dec_linear.1} parent=31 // pred_region
              %s280 = ssub.s32 256, 1
              loop: start=0, step=1, limit=1
              $region41: #{dec_linear.1} parent=39 // loop_pre_header
                _
              $region42: #{dec_linear.1} parent=39 // loop_header
                %s282 = sphi 0, %s286
                %p283 = scmp.ge.s32.totalorder %s282, 1
                %s287 = sphi %s272, %s272
                %s288 = sphi %s266, %s266
              $region43: #{dec_linear.1} parent=39 // loop_header_branch
                %285 = sbr.rel (%p283) target = $region47
              $region44: #{dec_linear.1} parent=39 // loop_body
                %v289 = vld [vmem:[%s287] sm:%s280]
                %290 = vst [vmem:[%s288] sm:%s280] %v289
                %v291 = vld [vmem:[%s287 + $0x10] sm:%s280]
                %292 = vst [vmem:[%s288 + $0x8] sm:%s280] %v291
                %v293 = vld [vmem:[%s287 + $0x20] sm:%s280]
                %294 = vst [vmem:[%s288 + $0x10] sm:%s280] %v293
                %v295 = vld [vmem:[%s287 + $0x30] sm:%s280]
                %296 = vst [vmem:[%s288 + $0x18] sm:%s280] %v295
                %v297 = vld [vmem:[%s287 + $0x40] sm:%s280]
                %298 = vst [vmem:[%s288 + $0x20] sm:%s280] %v297
                %v299 = vld [vmem:[%s287 + $0x50] sm:%s280]
                %300 = vst [vmem:[%s288 + $0x28] sm:%s280] %v299
                %v301 = vld [vmem:[%s287 + $0x60] sm:%s280]
                %302 = vst [vmem:[%s288 + $0x30] sm:%s280] %v301
                %v303 = vld [vmem:[%s287 + $0x70] sm:%s280]
                %304 = vst [vmem:[%s288 + $0x38] sm:%s280] %v303
                %v305 = vld [vmem:[%s287 + $0x80] sm:%s280]
                %306 = vst [vmem:[%s288 + $0x40] sm:%s280] %v305
                %v307 = vld [vmem:[%s287 + $0x90] sm:%s280]
                %308 = vst [vmem:[%s288 + $0x48] sm:%s280] %v307
                %v309 = vld [vmem:[%s287 + $0xa0] sm:%s280]
                %310 = vst [vmem:[%s288 + $0x50] sm:%s280] %v309
                %v311 = vld [vmem:[%s287 + $0xb0] sm:%s280]
                %312 = vst [vmem:[%s288 + $0x58] sm:%s280] %v311
                %v313 = vld [vmem:[%s287 + $0xc0] sm:%s280]
                %314 = vst [vmem:[%s288 + $0x60] sm:%s280] %v313
                %v315 = vld [vmem:[%s287 + $0xd0] sm:%s280]
                %316 = vst [vmem:[%s288 + $0x68] sm:%s280] %v315
                %v317 = vld [vmem:[%s287 + $0xe0] sm:%s280]
                %318 = vst [vmem:[%s288 + $0x70] sm:%s280] %v317
                %v319 = vld [vmem:[%s287 + $0xf0] sm:%s280]
                %320 = vst [vmem:[%s288 + $0x78] sm:%s280] %v319
              $region45: #{dec_linear.1} parent=39 // loop_footer
                %s286 = sadd.s32 1, %s282
              $region46: #{dec_linear.1} parent=39 // loop_footer_branch
                %281 = sbr.rel target = $region42
              $region47: #{dec_linear.1} parent=39 // loop_exit
                _
            $region40: #{dec_linear.1} parent=31 // pred_fallthru
              _
          $region32: #{dec_linear.1} parent=27 // pred_fallthru
            _
          %365 = vnop
        $region28: #{dec_linear.1} parent=15 // pred_fallthru
          _
        // Predicated region
        $region63: #{dec_linear.1} parent=15 // pred_check
          %p366 = pneg %p138
        $region64: #{dec_linear.1} parent=15 // pred_check_branch
          %368 = sbr.rel (%p366) target = $region66
        $region65: #{dec_linear.1} parent=15 // pred_region
          %s369 = sand.u32 %s128, 1
          %s370 = sand.u32 %s128, 1
          %s371 = smul.addr %s370, 32
          %s372 = scalar_lea.vmem [#allocation3], %s371
          %s373 = smul.u32 4, %s24
          %s374 = smul.addr %s373, 2
          %s375 = sadd.s32 %s23, %s374
          %s376 = smul.addr %s375, 8
          %s377 = scalar_lea.vmem %s3, %s376
          // Predicated region
          $region67: #{dec_linear.1} parent=65 // pred_check
            _
          $region68: #{dec_linear.1} parent=65 // pred_check_branch
            %379 = sbr.rel (0) target = $region70
          $region69: #{dec_linear.1} parent=65 // pred_region
            // Predicated region
            $region71: #{dec_linear.1} parent=69 // pred_check
              _
            $region72: #{dec_linear.1} parent=69 // pred_check_branch
              %381 = sbr.rel (0) target = $region74
            $region73: #{dec_linear.1} parent=69 // pred_region
              // Predicated region
              $region86: #{dec_linear.1} parent=73 // pred_check
                _
              $region87: #{dec_linear.1} parent=73 // pred_check_branch
                %403 = sbr.rel (0) target = $region89
              $region88: #{dec_linear.1} parent=73 // pred_region
                loop: start=0, step=1, limit=1
                $region90: #{dec_linear.1} parent=88 // loop_pre_header
                  _
                $region91: #{dec_linear.1} parent=88 // loop_header
                  %s405 = sphi 0, %s409
                  %p406 = scmp.ge.s32.totalorder %s405, 1
                  %s410 = sphi %s377, %s377
                  %s411 = sphi %s372, %s372
                $region92: #{dec_linear.1} parent=88 // loop_header_branch
                  %408 = sbr.rel (%p406) target = $region96
                $region93: #{dec_linear.1} parent=88 // loop_body
                  %v412 = vld [vmem:[%s410] sm:$0xff]
                  %413 = vst [vmem:[%s411] sm:$0xff] %v412
                  %v414 = vld [vmem:[%s410 + $0x10] sm:$0xff]
                  %415 = vst [vmem:[%s411 + $0x8] sm:$0xff] %v414
                  %v416 = vld [vmem:[%s410 + $0x20] sm:$0xff]
                  %417 = vst [vmem:[%s411 + $0x10] sm:$0xff] %v416
                  %v418 = vld [vmem:[%s410 + $0x30] sm:$0xff]
                  %419 = vst [vmem:[%s411 + $0x18] sm:$0xff] %v418
                $region94: #{dec_linear.1} parent=88 // loop_footer
                  %s409 = sadd.s32 1, %s405
                $region95: #{dec_linear.1} parent=88 // loop_footer_branch
                  %404 = sbr.rel target = $region91
                $region96: #{dec_linear.1} parent=88 // loop_exit
                  _
              $region89: #{dec_linear.1} parent=73 // pred_fallthru
                _
              // Predicated region
              $region97: #{dec_linear.1} parent=73 // pred_check
                _
              $region98: #{dec_linear.1} parent=73 // pred_check_branch
                %421 = sbr.rel target = $region100
              $region99: #{dec_linear.1} parent=73 // pred_region
                _
              $region100: #{dec_linear.1} parent=73 // pred_fallthru
                _
            $region74: #{dec_linear.1} parent=69 // pred_fallthru
              _
            // Predicated region
            $region75: #{dec_linear.1} parent=69 // pred_check
              _
            $region76: #{dec_linear.1} parent=69 // pred_check_branch
              %383 = sbr.rel target = $region78
            $region77: #{dec_linear.1} parent=69 // pred_region
              %s385 = ssub.s32 256, 1
              loop: start=0, step=1, limit=1
              $region79: #{dec_linear.1} parent=77 // loop_pre_header
                _
              $region80: #{dec_linear.1} parent=77 // loop_header
                %s387 = sphi 0, %s391
                %p388 = scmp.ge.s32.totalorder %s387, 1
                %s392 = sphi %s377, %s377
                %s393 = sphi %s372, %s372
              $region81: #{dec_linear.1} parent=77 // loop_header_branch
                %390 = sbr.rel (%p388) target = $region85
              $region82: #{dec_linear.1} parent=77 // loop_body
                %v394 = vld [vmem:[%s392] sm:%s385]
                %395 = vst [vmem:[%s393] sm:%s385] %v394
                %v396 = vld [vmem:[%s392 + $0x10] sm:%s385]
                %397 = vst [vmem:[%s393 + $0x8] sm:%s385] %v396
                %v398 = vld [vmem:[%s392 + $0x20] sm:%s385]
                %399 = vst [vmem:[%s393 + $0x10] sm:%s385] %v398
                %v400 = vld [vmem:[%s392 + $0x30] sm:%s385]
                %401 = vst [vmem:[%s393 + $0x18] sm:%s385] %v400
              $region83: #{dec_linear.1} parent=77 // loop_footer
                %s391 = sadd.s32 1, %s387
              $region84: #{dec_linear.1} parent=77 // loop_footer_branch
                %386 = sbr.rel target = $region80
              $region85: #{dec_linear.1} parent=77 // loop_exit
                _
            $region78: #{dec_linear.1} parent=69 // pred_fallthru
              _
          $region70: #{dec_linear.1} parent=65 // pred_fallthru
            _
          %422 = vnop
        $region66: #{dec_linear.1} parent=15 // pred_fallthru
          _
        // Predicated region
        $region101: #{dec_linear.1} parent=15 // pred_check
          %p423 = pneg %p164
        $region102: #{dec_linear.1} parent=15 // pred_check_branch
          %425 = sbr.rel (%p423) target = $region104
        $region103: #{dec_linear.1} parent=15 // pred_region
          %s426 = smul.u32 2, %s23
          %p427 = scmp.lt.s32.totalorder %s426, 3
          %s428 = scalar_select %p427, %s426, 3
          %s429 = scalar_lea.vmem %s4, %s428
          %s430 = smul.u32 2, %s23
        $region104: #{dec_linear.1} parent=15 // pred_fallthru
          _
        // Predicated region
        $region105: #{dec_linear.1} parent=15 // pred_check
          %p431 = pneg %p190
        $region106: #{dec_linear.1} parent=15 // pred_check_branch
          %433 = sbr.rel (%p431) target = $region108
        $region107: #{dec_linear.1} parent=15 // pred_region
          %s434 = smul.u32 2, %s23
          %p435 = scmp.lt.s32.totalorder %s434, 3
          %s436 = scalar_select %p435, %s434, 3
          %s437 = scalar_lea.vmem %s5, %s436
          %s438 = smul.u32 2, %s23
        $region108: #{dec_linear.1} parent=15 // pred_fallthru
          _
      $region16: #{dec_linear.1} parent=5 // pred_fallthru
        _
      %p439 = scmp.le.s32.totalorder 1, %s15
      %p440 = scmp.lt.s32.totalorder %s15, 9
      %p441 = pnand %p439, %p440
      %p442 = pneg %p441
      // Predicated region
      $region109: #{dec_linear.1} parent=5 // pred_check
        _
      $region110: #{dec_linear.1} parent=5 // pred_check_branch
        %444 = sbr.rel (%p441) target = $region112
      $region111: #{dec_linear.1} parent=5 // pred_region
        %s445 = ssub.s32 %s15, 1
        %s446 = sand.u32 %s103, 1
        %s447 = sand.u32 %s103, 1
        %s448 = smul.addr %s447, 128
        %s449 = scalar_lea.vmem [#allocation2], %s448
        // Predicated region
        $region113: #{dec_linear.1} parent=111 // pred_check
          %p450 = pneg %p116
        $region114: #{dec_linear.1} parent=111 // pred_check_branch
          %452 = sbr.rel (%p450) target = $region116
        $region115: #{dec_linear.1} parent=111 // pred_region
          _
        $region116: #{dec_linear.1} parent=111 // pred_fallthru
          _
        %s453 = sand.u32 %s131, 1
        %s454 = sand.u32 %s131, 1
        %s455 = smul.addr %s454, 32
        %s456 = scalar_lea.vmem [#allocation3], %s455
        // Predicated region
        $region117: #{dec_linear.1} parent=111 // pred_check
          %p457 = pneg %p144
        $region118: #{dec_linear.1} parent=111 // pred_check_branch
          %459 = sbr.rel (%p457) target = $region120
        $region119: #{dec_linear.1} parent=111 // pred_region
          _
        $region120: #{dec_linear.1} parent=111 // pred_fallthru
          _
        %p460 = scmp.lt.s32.totalorder %s25, 1
        %s461 = scalar_select %p460, %s25, 1
        %p462 = scmp.lt.s32.totalorder %s27, 1
        %s463 = scalar_select %p462, %s27, 1
        %s464 = smul.addr %s461, 2
        %s465 = sadd.s32 %s463, %s464
        %s466 = smul.addr %s465, 4
        %s467 = scalar_lea.vmem %s0, %s466
        %p468 = pneg %p62
        %p469 = pneg %p59
        %p470 = scmp.lt.s32.totalorder %s27, 1
        %s471 = scalar_select %p470, %s27, 1
        %s472 = scalar_lea.vmem %s1, %s471
        %p473 = pneg %p88
        %p474 = pneg %p85
        %s475 = sand.u32 %s103, 1
        %s476 = sand.u32 %s103, 1
        %s477 = smul.addr %s476, 128
        %s478 = scalar_lea.vmem [#allocation2], %s477
        %p479 = pneg %p116
        %p480 = pneg %p113
        %s481 = sand.u32 %s131, 1
        %s482 = sand.u32 %s131, 1
        %s483 = smul.addr %s482, 32
        %s484 = scalar_lea.vmem [#allocation3], %s483
        %p485 = pneg %p144
        %p486 = pneg %p141
        %s487 = smul.u32 2, %s26
        %p488 = scmp.lt.s32.totalorder %s487, 3
        %s489 = scalar_select %p488, %s487, 3
        %s490 = scalar_lea.vmem %s4, %s489
        %p491 = pneg %p170
        %p492 = pneg %p167
        %s493 = smul.u32 2, %s26
        %p494 = scmp.lt.s32.totalorder %s493, 3
        %s495 = scalar_select %p494, %s493, 3
        %s496 = scalar_lea.vmem %s5, %s495
        %p497 = pneg %p196
        %p498 = pneg %p193
        %p499 = pneg %p224
        %p500 = pneg %p221
        %s501 = sand.u32 %s211, 1
        %s502 = scalar_lea.sflag [#allocation5], %s501
        %s503 = sand.u32 %s211, 1
        %s504 = smul.addr %s503, 16
        %s505 = scalar_lea.vmem [#allocation4], %s504
        %p506 = scmp.lt.s32.totalorder %s25, 1
        %s507 = scalar_select %p506, %s25, 1
        %p508 = scmp.lt.s32.totalorder %s27, 1
        %s509 = scalar_select %p508, %s27, 1
        %s510 = smul.addr %s507, 2
        %s511 = sadd.s32 %s509, %s510
        %s512 = smul.addr %s511, 4
        %s513 = scalar_lea.vmem %s0, %s512
        %p514 = scmp.lt.s32.totalorder %s27, 1
        %s515 = scalar_select %p514, %s27, 1
        %s516 = scalar_lea.vmem %s1, %s515
        %s517 = smul.u32 16, %s27
        %s518 = smul.u32 2, %s26
        %s519 = smul.u32 4, %s27
        %s520 = smul.u32 2, %s26
        %p521 = scmp.lt.s32.totalorder %s520, 3
        %s522 = scalar_select %p521, %s520, 3
        %s523 = scalar_lea.vmem %s4, %s522
        %s524 = smul.u32 2, %s26
        %s525 = smul.u32 2, %s26
        %p526 = scmp.lt.s32.totalorder %s525, 3
        %s527 = scalar_select %p526, %s525, 3
        %s528 = scalar_lea.vmem %s5, %s527
        %s529 = smul.u32 2, %s26
        %s530 = smul.u32 2, %s26
        %p532 = scmp.eq.s32.totalorder %s27, 0
        // Predicated region
        $region121: #{dec_linear.1} parent=111 // pred_check
          %p533 = pneg %p532
        $region122: #{dec_linear.1} parent=111 // pred_check_branch
          %535 = sbr.rel (%p533) target = $region124
        $region123: #{dec_linear.1} parent=111 // pred_region
          %v536 = vld [vmem:[%s523] sm:$0x3]
          %v538 = vlaneseq
          %v539 = vshrl.u32 %v538, 7
          %v540 = vsub.s32 0, %v539
          %v541 = vrot.slane %v536, %v540
          %v542 = vlaneseq
          %v543 = vshrl.u32 %v542, 7
          %v544 = vsub.s32 1, %v543
          %v545 = vrot.slane %v536, %v544
          %548 = vst [vmem:[%s505] sm:$0xff] %v541
          %549 = vst [vmem:[%s505 + $0x8] sm:$0xff] %v545
        $region124: #{dec_linear.1} parent=111 // pred_fallthru
          _
        %v550 = vld [vmem:[%s513] sm:$0xf]
        %v551 = vunpack.c.l.bf16 %v550
        %v552 = vand.u32 2147483647, %v551
        %v553 = vld [vmem:[%s516] sm:$0x1]
        %v555 = vlaneseq
        %v556 = vshrl.u32 %v555, 7
        %v557 = vsub.s32 0, %v556
        %v558 = vrot.slane %v553, %v557
        %vm560 = vcmp.gt.f32.partialorder %v552, %v558
        %vm561 = vmpackc.low %vm560, %vm560
        %v562 = vsel %vm561, %v550, 0
        %v563 = vld [vmem:[%s505] sm:$0xff]
        %v564 = vld [vmem:[%s505 + $0x8] sm:$0xff]
        %v565 = vld [vmem:[%s449] sm:$0xff]
        %v566 = vld [vmem:[%s449 + $0x8] sm:$0xff]
        %v567 = vld [vmem:[%s449 + $0x10] sm:$0xff]
        %v568 = vld [vmem:[%s449 + $0x18] sm:$0xff]
        %v569 = vld [vmem:[%s449 + $0x20] sm:$0xff]
        %v570 = vld [vmem:[%s449 + $0x28] sm:$0xff]
        %v571 = vld [vmem:[%s449 + $0x30] sm:$0xff]
        %v572 = vld [vmem:[%s449 + $0x38] sm:$0xff]
        %v573 = vld [vmem:[%s449 + $0x40] sm:$0xff]
        %v574 = vld [vmem:[%s449 + $0x48] sm:$0xff]
        %v575 = vld [vmem:[%s449 + $0x50] sm:$0xff]
        %v576 = vld [vmem:[%s449 + $0x58] sm:$0xff]
        %v577 = vld [vmem:[%s449 + $0x60] sm:$0xff]
        %v578 = vld [vmem:[%s449 + $0x68] sm:$0xff]
        %v579 = vld [vmem:[%s449 + $0x70] sm:$0xff]
        %v580 = vld [vmem:[%s449 + $0x78] sm:$0xff]
        %v597 = vunpack.c.l.b16 %v565
        %v598 = vunpack.c.h.b16 %v565
        %v599 = vunpack.c.l.b16 %v566
        %v600 = vunpack.c.h.b16 %v566
        %v601 = vunpack.c.l.b16 %v567
        %v602 = vunpack.c.h.b16 %v567
        %v603 = vunpack.c.l.b16 %v568
        %v604 = vunpack.c.h.b16 %v568
        %v605 = vunpack.c.l.b16 %v569
        %v606 = vunpack.c.h.b16 %v569
        %v607 = vunpack.c.l.b16 %v570
        %v608 = vunpack.c.h.b16 %v570
        %v609 = vunpack.c.l.b16 %v571
        %v610 = vunpack.c.h.b16 %v571
        %v611 = vunpack.c.l.b16 %v572
        %v612 = vunpack.c.h.b16 %v572
        %v613 = vunpack.c.l.b16 %v573
        %v614 = vunpack.c.h.b16 %v573
        %v615 = vunpack.c.l.b16 %v574
        %v616 = vunpack.c.h.b16 %v574
        %v617 = vunpack.c.l.b16 %v575
        %v618 = vunpack.c.h.b16 %v575
        %v619 = vunpack.c.l.b16 %v576
        %v620 = vunpack.c.h.b16 %v576
        %v621 = vunpack.c.l.b16 %v577
        %v622 = vunpack.c.h.b16 %v577
        %v623 = vunpack.c.l.b16 %v578
        %v624 = vunpack.c.h.b16 %v578
        %v625 = vunpack.c.l.b16 %v579
        %v626 = vunpack.c.h.b16 %v579
        %v627 = vunpack.c.l.b16 %v580
        %v628 = vunpack.c.h.b16 %v580
        %v629 = vpack.c.b16 %v599, %v597
        %v630 = vpack.c.b16 %v600, %v598
        %v631 = vpack.c.b16 %v603, %v601
        %v632 = vpack.c.b16 %v604, %v602
        %v633 = vpack.c.b16 %v607, %v605
        %v634 = vpack.c.b16 %v608, %v606
        %v635 = vpack.c.b16 %v611, %v609
        %v636 = vpack.c.b16 %v612, %v610
        %v637 = vpack.c.b16 %v615, %v613
        %v638 = vpack.c.b16 %v616, %v614
        %v639 = vpack.c.b16 %v619, %v617
        %v640 = vpack.c.b16 %v620, %v618
        %v641 = vpack.c.b16 %v623, %v621
        %v642 = vpack.c.b16 %v624, %v622
        %v643 = vpack.c.b16 %v627, %v625
        %v644 = vpack.c.b16 %v628, %v626
        %661 = vmatprep.subr.bf16.mxu0 %v644
        %662 = vmatpush1.bf16.msra.mxu0 %v643
        %663 = vmatprep.subr.bf16.mxu0 %v642
        %664 = vmatpush1.bf16.msra.mxu0 %v641
        %665 = vmatprep.subr.bf16.mxu0 %v640
        %666 = vmatpush1.bf16.msra.mxu0 %v639
        %667 = vmatprep.subr.bf16.mxu0 %v638
        %668 = vmatpush1.bf16.msra.mxu0 %v637
        %669 = vmatprep.subr.bf16.mxu0 %v636
        %670 = vmatpush1.bf16.msra.mxu0 %v635
        %671 = vmatprep.subr.bf16.mxu0 %v634
        %672 = vmatpush1.bf16.msra.mxu0 %v633
        %673 = vmatprep.subr.bf16.mxu0 %v632
        %674 = vmatpush1.bf16.msra.mxu0 %v631
        %675 = vmatprep.subr.bf16.mxu0 %v630
        %676 = vmatpush1.bf16.msra.mxu0 %v629
        %677 = vmatprep.subr.bf16.mxu0 0
        %678 = vmatpush2.bf16.msra.mxu0 0
        %679 = vmatprep.subr.bf16.mxu0 0
        %680 = vmatpush2.bf16.msra.mxu0 0
        %681 = vmatprep.subr.bf16.mxu0 0
        %682 = vmatpush2.bf16.msra.mxu0 0
        %683 = vmatprep.subr.bf16.mxu0 0
        %684 = vmatpush2.bf16.msra.mxu0 0
        %685 = vmatprep.subr.bf16.mxu0 0
        %686 = vmatpush2.bf16.msra.mxu0 0
        %687 = vmatprep.subr.bf16.mxu0 0
        %688 = vmatpush2.bf16.msra.mxu0 0
        %689 = vmatprep.subr.bf16.mxu0 0
        %690 = vmatpush2.bf16.msra.mxu0 0
        %691 = vmatprep.subr.bf16.mxu0 0
        %692 = vmatpush2.bf16.msra.mxu0 0
        %693 = vmatprep.mubr.bf16.mxu0 0
        %694 = vmatmul.mubr.bf16.gmra.mxu0 %v550
        %v695 = vpop.f32.mrf.mxu0
        %v696 = vadd.f32 0.0, %v695
        %v697 = vpop.f32.mrf.mxu0
        %v698 = vadd.f32 0.0, %v697
        %v699 = vpop.f32.mrf.mxu0
        %v700 = vpop.f32.mrf.mxu0
        %701 = vdwg.mxu0
        %v702 = vadd.f32 %v563, %v696
        %v703 = vadd.f32 %v564, %v698
        %704 = vst [vmem:[%s505] sm:$0xff] %v702
        %705 = vst [vmem:[%s505 + $0x8] sm:$0xff] %v703
        %v706 = vld [vmem:[%s456] sm:$0xff]
        %v707 = vld [vmem:[%s456 + $0x8] sm:$0xff]
        %v708 = vld [vmem:[%s456 + $0x10] sm:$0xff]
        %v709 = vld [vmem:[%s456 + $0x18] sm:$0xff]
        %v710 = vunpack.c.0.s8 %v706
        %v711 = vunpack.c.1.s8 %v706
        %v712 = vunpack.c.2.s8 %v706
        %v713 = vunpack.c.3.s8 %v706
        %v714 = vunpack.c.0.s8 %v707
        %v715 = vunpack.c.1.s8 %v707
        %v716 = vunpack.c.2.s8 %v707
        %v717 = vunpack.c.3.s8 %v707
        %v718 = vunpack.c.0.s8 %v708
        %v719 = vunpack.c.1.s8 %v708
        %v720 = vunpack.c.2.s8 %v708
        %v721 = vunpack.c.3.s8 %v708
        %v722 = vunpack.c.0.s8 %v709
        %v723 = vunpack.c.1.s8 %v709
        %v724 = vunpack.c.2.s8 %v709
        %v725 = vunpack.c.3.s8 %v709
        %v726 = vand.u32 %v710, 255
        %v727 = vand.u32 %v711, 255
        %v728 = vand.u32 %v712, 255
        %v729 = vand.u32 %v713, 255
        %v730 = vand.u32 %v714, 255
        %v731 = vand.u32 %v715, 255
        %v732 = vand.u32 %v716, 255
        %v733 = vand.u32 %v717, 255
        %v734 = vand.u32 %v718, 255
        %v735 = vand.u32 %v719, 255
        %v736 = vand.u32 %v720, 255
        %v737 = vand.u32 %v721, 255
        %v738 = vand.u32 %v722, 255
        %v739 = vand.u32 %v723, 255
        %v740 = vand.u32 %v724, 255
        %v741 = vand.u32 %v725, 255
        %v742 = vshll.u32 %v726, 28
        %v743 = vshll.u32 %v727, 28
        %v744 = vshll.u32 %v728, 28
        %v745 = vshll.u32 %v729, 28
        %v746 = vshll.u32 %v730, 28
        %v747 = vshll.u32 %v731, 28
        %v748 = vshll.u32 %v732, 28
        %v749 = vshll.u32 %v733, 28
        %v750 = vshll.u32 %v734, 28
        %v751 = vshll.u32 %v735, 28
        %v752 = vshll.u32 %v736, 28
        %v753 = vshll.u32 %v737, 28
        %v754 = vshll.u32 %v738, 28
        %v755 = vshll.u32 %v739, 28
        %v756 = vshll.u32 %v740, 28
        %v757 = vshll.u32 %v741, 28
        %v758 = vshra.s32 %v742, 28
        %v759 = vshra.s32 %v743, 28
        %v760 = vshra.s32 %v744, 28
        %v761 = vshra.s32 %v745, 28
        %v762 = vshra.s32 %v746, 28
        %v763 = vshra.s32 %v747, 28
        %v764 = vshra.s32 %v748, 28
        %v765 = vshra.s32 %v749, 28
        %v766 = vshra.s32 %v750, 28
        %v767 = vshra.s32 %v751, 28
        %v768 = vshra.s32 %v752, 28
        %v769 = vshra.s32 %v753, 28
        %v770 = vshra.s32 %v754, 28
        %v771 = vshra.s32 %v755, 28
        %v772 = vshra.s32 %v756, 28
        %v773 = vshra.s32 %v757, 28
        %v774 = vcvt.s32.f32 %v758
        %v775 = vcvt.s32.f32 %v759
        %v776 = vcvt.s32.f32 %v760
        %v777 = vcvt.s32.f32 %v761
        %v778 = vcvt.s32.f32 %v762
        %v779 = vcvt.s32.f32 %v763
        %v780 = vcvt.s32.f32 %v764
        %v781 = vcvt.s32.f32 %v765
        %v782 = vcvt.s32.f32 %v766
        %v783 = vcvt.s32.f32 %v767
        %v784 = vcvt.s32.f32 %v768
        %v785 = vcvt.s32.f32 %v769
        %v786 = vcvt.s32.f32 %v770
        %v787 = vcvt.s32.f32 %v771
        %v788 = vcvt.s32.f32 %v772
        %v789 = vcvt.s32.f32 %v773
        %v790 = vpack.c.bf16 %v775, %v774
        %v791 = vpack.c.bf16 %v777, %v776
        %v792 = vpack.c.bf16 %v779, %v778
        %v793 = vpack.c.bf16 %v781, %v780
        %v794 = vpack.c.bf16 %v783, %v782
        %v795 = vpack.c.bf16 %v785, %v784
        %v796 = vpack.c.bf16 %v787, %v786
        %v797 = vpack.c.bf16 %v789, %v788
        %v798 = vshll.u32 %v726, 24
        %v799 = vshll.u32 %v727, 24
        %v800 = vshll.u32 %v728, 24
        %v801 = vshll.u32 %v729, 24
        %v802 = vshll.u32 %v730, 24
        %v803 = vshll.u32 %v731, 24
        %v804 = vshll.u32 %v732, 24
        %v805 = vshll.u32 %v733, 24
        %v806 = vshll.u32 %v734, 24
        %v807 = vshll.u32 %v735, 24
        %v808 = vshll.u32 %v736, 24
        %v809 = vshll.u32 %v737, 24
        %v810 = vshll.u32 %v738, 24
        %v811 = vshll.u32 %v739, 24
        %v812 = vshll.u32 %v740, 24
        %v813 = vshll.u32 %v741, 24
        %v814 = vshra.s32 %v798, 28
        %v815 = vshra.s32 %v799, 28
        %v816 = vshra.s32 %v800, 28
        %v817 = vshra.s32 %v801, 28
        %v818 = vshra.s32 %v802, 28
        %v819 = vshra.s32 %v803, 28
        %v820 = vshra.s32 %v804, 28
        %v821 = vshra.s32 %v805, 28
        %v822 = vshra.s32 %v806, 28
        %v823 = vshra.s32 %v807, 28
        %v824 = vshra.s32 %v808, 28
        %v825 = vshra.s32 %v809, 28
        %v826 = vshra.s32 %v810, 28
        %v827 = vshra.s32 %v811, 28
        %v828 = vshra.s32 %v812, 28
        %v829 = vshra.s32 %v813, 28
        %v830 = vcvt.s32.f32 %v814
        %v831 = vcvt.s32.f32 %v815
        %v832 = vcvt.s32.f32 %v816
        %v833 = vcvt.s32.f32 %v817
        %v834 = vcvt.s32.f32 %v818
        %v835 = vcvt.s32.f32 %v819
        %v836 = vcvt.s32.f32 %v820
        %v837 = vcvt.s32.f32 %v821
        %v838 = vcvt.s32.f32 %v822
        %v839 = vcvt.s32.f32 %v823
        %v840 = vcvt.s32.f32 %v824
        %v841 = vcvt.s32.f32 %v825
        %v842 = vcvt.s32.f32 %v826
        %v843 = vcvt.s32.f32 %v827
        %v844 = vcvt.s32.f32 %v828
        %v845 = vcvt.s32.f32 %v829
        %v846 = vpack.c.bf16 %v831, %v830
        %v847 = vpack.c.bf16 %v833, %v832
        %v848 = vpack.c.bf16 %v835, %v834
        %v849 = vpack.c.bf16 %v837, %v836
        %v850 = vpack.c.bf16 %v839, %v838
        %v851 = vpack.c.bf16 %v841, %v840
        %v852 = vpack.c.bf16 %v843, %v842
        %v853 = vpack.c.bf16 %v845, %v844
        %v854 = vld [vmem:[%s505] sm:$0xff]
        %855 = vmatprep.subr.bf16.mxu0 0
        %856 = vmatpush1.bf16.msra.mxu0 %v797
        %857 = vmatprep.subr.bf16.mxu0 0
        %858 = vmatpush1.bf16.msra.mxu0 %v796
        %859 = vmatprep.subr.bf16.mxu0 0
        %860 = vmatpush1.bf16.msra.mxu0 %v795
        %861 = vmatprep.subr.bf16.mxu0 0
        %862 = vmatpush1.bf16.msra.mxu0 %v794
        %863 = vmatprep.subr.bf16.mxu0 0
        %864 = vmatpush1.bf16.msra.mxu0 %v793
        %865 = vmatprep.subr.bf16.mxu0 0
        %866 = vmatpush1.bf16.msra.mxu0 %v792
        %867 = vmatprep.subr.bf16.mxu0 0
        %868 = vmatpush1.bf16.msra.mxu0 %v791
        %869 = vmatprep.subr.bf16.mxu0 0
        %870 = vmatpush1.bf16.msra.mxu0 %v790
        %871 = vmatprep.subr.bf16.mxu0 0
        %872 = vmatpush2.bf16.msra.mxu0 0
        %873 = vmatprep.subr.bf16.mxu0 0
        %874 = vmatpush2.bf16.msra.mxu0 0
        %875 = vmatprep.subr.bf16.mxu0 0
        %876 = vmatpush2.bf16.msra.mxu0 0
        %877 = vmatprep.subr.bf16.mxu0 0
        %878 = vmatpush2.bf16.msra.mxu0 0
        %879 = vmatprep.subr.bf16.mxu0 0
        %880 = vmatpush2.bf16.msra.mxu0 0
        %881 = vmatprep.subr.bf16.mxu0 0
        %882 = vmatpush2.bf16.msra.mxu0 0
        %883 = vmatprep.subr.bf16.mxu0 0
        %884 = vmatpush2.bf16.msra.mxu0 0
        %885 = vmatprep.subr.bf16.mxu0 0
        %886 = vmatpush2.bf16.msra.mxu0 0
        %887 = vmatprep.mubr.bf16.mxu0 0
        %888 = vmatmul.mubr.bf16.gmra.mxu0 %v562
        %v889 = vpop.f32.mrf.mxu0
        %v890 = vadd.f32 0.0, %v889
        %v891 = vpop.f32.mrf.mxu0
        %v892 = vpop.f32.mrf.mxu0
        %v893 = vpop.f32.mrf.mxu0
        %894 = vdwg.mxu0
        %v895 = vld [vmem:[%s528] sm:$0x1]
        %v897 = vlaneseq
        %v898 = vshrl.u32 %v897, 7
        %v899 = vsub.s32 0, %v898
        %v900 = vrot.slane %v895, %v899
        %v902 = vmul.f32 %v890, %v900
        %v903 = vadd.f32 %v854, %v902
        %904 = vst [vmem:[%s505] sm:$0xff] %v903
        %v905 = vld [vmem:[%s505 + $0x8] sm:$0xff]
        %906 = vmatprep.subr.bf16.mxu0 0
        %907 = vmatpush1.bf16.msra.mxu0 %v853
        %908 = vmatprep.subr.bf16.mxu0 0
        %909 = vmatpush1.bf16.msra.mxu0 %v852
        %910 = vmatprep.subr.bf16.mxu0 0
        %911 = vmatpush1.bf16.msra.mxu0 %v851
        %912 = vmatprep.subr.bf16.mxu0 0
        %913 = vmatpush1.bf16.msra.mxu0 %v850
        %914 = vmatprep.subr.bf16.mxu0 0
        %915 = vmatpush1.bf16.msra.mxu0 %v849
        %916 = vmatprep.subr.bf16.mxu0 0
        %917 = vmatpush1.bf16.msra.mxu0 %v848
        %918 = vmatprep.subr.bf16.mxu0 0
        %919 = vmatpush1.bf16.msra.mxu0 %v847
        %920 = vmatprep.subr.bf16.mxu0 0
        %921 = vmatpush1.bf16.msra.mxu0 %v846
        %922 = vmatprep.subr.bf16.mxu0 0
        %923 = vmatpush2.bf16.msra.mxu0 0
        %924 = vmatprep.subr.bf16.mxu0 0
        %925 = vmatpush2.bf16.msra.mxu0 0
        %926 = vmatprep.subr.bf16.mxu0 0
        %927 = vmatpush2.bf16.msra.mxu0 0
        %928 = vmatprep.subr.bf16.mxu0 0
        %929 = vmatpush2.bf16.msra.mxu0 0
        %930 = vmatprep.subr.bf16.mxu0 0
        %931 = vmatpush2.bf16.msra.mxu0 0
        %932 = vmatprep.subr.bf16.mxu0 0
        %933 = vmatpush2.bf16.msra.mxu0 0
        %934 = vmatprep.subr.bf16.mxu0 0
        %935 = vmatpush2.bf16.msra.mxu0 0
        %936 = vmatprep.subr.bf16.mxu0 0
        %937 = vmatpush2.bf16.msra.mxu0 0
        %938 = vmatprep.mubr.bf16.mxu0 0
        %939 = vmatmul.mubr.bf16.gmra.mxu0 %v562
        %v940 = vpop.f32.mrf.mxu0
        %v941 = vadd.f32 0.0, %v940
        %v942 = vpop.f32.mrf.mxu0
        %v943 = vpop.f32.mrf.mxu0
        %v944 = vpop.f32.mrf.mxu0
        %945 = vdwg.mxu0
        %v946 = vld [vmem:[%s528 + $0x1] sm:$0x1]
        %v948 = vlaneseq
        %v949 = vshrl.u32 %v948, 7
        %v950 = vsub.s32 0, %v949
        %v951 = vrot.slane %v946, %v950
        %v953 = vmul.f32 %v941, %v951
        %v954 = vadd.f32 %v905, %v953
        %955 = vst [vmem:[%s505 + $0x8] sm:$0xff] %v954
        %s956 = sand.u32 %s211, 1
        %s957 = scalar_lea.sflag [#allocation5], %s956
        %s958 = sand.u32 %s211, 1
        %s959 = smul.addr %s958, 16
        %s960 = scalar_lea.vmem [#allocation4], %s959
        // Predicated region
        $region125: #{dec_linear.1} parent=111 // pred_check
          %p961 = pneg %p221
        $region126: #{dec_linear.1} parent=111 // pred_check_branch
          %963 = sbr.rel (%p961) target = $region128
        $region127: #{dec_linear.1} parent=111 // pred_region
          %s964 = smul.u32 2, %s26
          %s966 = ssub.s32 256, 256
          %967 = vsyncadd %s957, %s966
          %s968 = smul.addr %s25, 4
          %s969 = sadd.s32 %s964, %s968
          %s970 = smul.addr %s969, 128
          %s971 = scalar_lea.hbm %s6, %s970
          %s973 = sshll.u32 %s960, 4
          %s974 = int_to_ptr.vmem [resolvable:$true] %s973
          %976 = dma.vmem_to_hbm [thread:$0]  %s974, 256, %s971, %s957
        $region128: #{dec_linear.1} parent=111 // pred_fallthru
          _
      $region112: #{dec_linear.1} parent=5 // pred_fallthru
        _
      %p977 = scmp.le.s32.totalorder 2, %s15
      // Predicated region
      $region129: #{dec_linear.1} parent=5 // pred_check
        %p978 = pneg %p977
      $region130: #{dec_linear.1} parent=5 // pred_check_branch
        %980 = sbr.rel (%p978) target = $region132
      $region131: #{dec_linear.1} parent=5 // pred_region
        %s981 = ssub.s32 %s15, 2
        // Predicated region
        $region133: #{dec_linear.1} parent=131 // pred_check
          %p982 = pneg %p227
        $region134: #{dec_linear.1} parent=131 // pred_check_branch
          %984 = sbr.rel (%p982) target = $region136
        $region135: #{dec_linear.1} parent=131 // pred_region
          %s985 = sand.u32 %s212, 1
          %s986 = scalar_lea.sflag [#allocation5], %s985
          %s987 = sand.u32 %s212, 1
          %s988 = smul.addr %s987, 16
          %s989 = scalar_lea.vmem [#allocation4], %s988
          %990 = dma.done %s986, 256
        $region136: #{dec_linear.1} parent=131 // pred_fallthru
          _
      $region132: #{dec_linear.1} parent=5 // pred_fallthru
        _
    $region6: #{dec_linear.1} parent=1 // loop_footer
      %s19 = sadd.s32 1, %s15
    $region7: #{dec_linear.1} parent=1 // loop_footer_branch
      %14 = sbr.rel target = $region3
    $region8: #{dec_linear.1} parent=1 // loop_exit
      _
    %991 = vsyncpa [#allocation5], 1
    %s992 = scalar_lea.sflag [#allocation5], 1
    %993 = vsyncpa %s992, 1

</llo_original>
